<compile_context>
chip_gen: v7x
topology: tpu7x:2x2x1
jax: 0.10.0
libtpu: 0.0.40
codegen_flags: <defaults>
</compile_context>

<pallas_src>
from functools import partial

import jax
import jax.numpy as jnp
from jax import lax
from jax.experimental import pallas as pl
from jax.experimental.pallas import tpu as pltpu


def _device_supports_bf16_eup():
    """bf16 transcendental path exists on v6e / v7x, not on v5e and earlier."""
    try:
        kind = jax.devices()[0].device_kind.lower()
    except Exception:
        return False
    return ("v6" in kind) or ("v7" in kind)


def _attention_kernel(x_ref, wqkv_ref, wproj_ref, bproj_ref,   # inputs
                      out_ref, cls_ref,                        # outputs
                      qkv_scr, ctx_scr, cls_scr,               # VMEM scratch
                      *, num_heads, q_chunk, exp_dtype):
    """One grid step handles one batch element.

    x_ref:    (1, N, C)  input tokens (original dtype; cast to bf16 in-kernel)
    wqkv_ref: (C, 3C)    bf16 fused QKV weight, Q columns pre-scaled by 1/sqrt(hd)
    wproj_ref:(C, C)     bf16 output projection weight
    bproj_ref:(1, C)     f32 output projection bias
    out_ref:  (1, N, C)  projected output
    cls_ref:  (1, 1, N)  head-averaged attention row of the CLS token
    qkv_scr:  (N, 3C)    bf16 fused QKV activations
    ctx_scr:  (N, C)     bf16 head-concatenated context
    cls_scr:  (1, N)     f32 CLS attention row accumulator (over heads)
    """
    x = x_ref[0].astype(jnp.bfloat16)            # (N, C) bf16, cast in-kernel
    N, C = x.shape
    hd = C // num_heads

    # One full-width QKV projection (K=C, width 3C -> fully packed MXU), staged to VMEM.
    qkv_scr[...] = jnp.dot(
        x, wqkv_ref[...], preferred_element_type=jnp.float32
    ).astype(qkv_scr.dtype)

    cls_scr[...] = jnp.zeros_like(cls_scr)

    # Static loop over heads; query-row tiling keeps the live score tile small.
    for h in range(num_heads):
        k = qkv_scr[:, C + h * hd:C + (h + 1) * hd]          # (N, hd) bf16
        v = qkv_scr[:, 2 * C + h * hd:2 * C + (h + 1) * hd]  # (N, hd) bf16

        for r0 in range(0, N, q_chunk):
            r1 = min(r0 + q_chunk, N)
            q = qkv_scr[r0:r1, h * hd:(h + 1) * hd]          # (rc, hd) bf16 (pre-scaled)

            # q @ k^T without materializing a transpose (contract dim 1 of both).
            s = lax.dot_general(q, k, (((1,), (1,)), ((), ())),
                                preferred_element_type=jnp.float32)      # (rc, N) f32

            # Numerically stable softmax; exp in bf16 on v6e/v7x, f32 on v5e.
            s = s - jnp.max(s, axis=-1, keepdims=True)
            p = jnp.exp(s.astype(exp_dtype))                             # (rc, N)
            denom = jnp.sum(p.astype(jnp.float32), axis=-1, keepdims=True)  # (rc, 1) f32

            # Deferred normalization: PV matmul on un-normalized probs, then scale the
            # small (rc, hd) context by the per-row reciprocal (EUP, approx).
            ctx = jnp.dot(p.astype(v.dtype), v,
                          preferred_element_type=jnp.float32)            # (rc, hd) f32
            recip = pl.reciprocal(denom, approx=True)                    # (rc, 1) f32
            ctx_scr[r0:r1, h * hd:(h + 1) * hd] = (ctx * recip).astype(ctx_scr.dtype)

            # CLS-token attention row: normalize row 0 exactly (user-visible output).
            if r0 == 0:
                cls_scr[...] = cls_scr[...] + (
                    p[0:1, :].astype(jnp.float32) / denom[0:1, :])

    # Single K=C output projection on the concatenated context + bias.
    out = jnp.dot(ctx_scr[...], wproj_ref[...],
                  preferred_element_type=jnp.float32) + bproj_ref[...]
    out_ref[0] = out.astype(out_ref.dtype)
    cls_ref[0] = (cls_scr[...] * (1.0 / num_heads)).astype(cls_ref.dtype)


def prepare_attention_params(w_qkv, w_proj, b_proj, num_heads):
    """One-time parameter prep (do NOT redo per forward):
    fold 1/sqrt(hd) into the Q columns of the fused QKV weight and cast to bf16."""
    C = w_proj.shape[0]
    hd = C // num_heads
    scale = hd ** (-0.5)
    w_qkv = jnp.asarray(w_qkv, jnp.float32)
    w_qkv = jnp.concatenate([w_qkv[:, :C] * scale, w_qkv[:, C:]], axis=1)
    return (w_qkv.astype(jnp.bfloat16),
            jnp.asarray(w_proj, jnp.float32).astype(jnp.bfloat16),
            jnp.asarray(b_proj, jnp.float32).reshape(1, C))


def attention_forward(x, wqkv_bf, wproj_bf, bproj_f32, num_heads,
                      *, q_chunk=128, bf16_exp=None):
    """Pallas implementation of Attention.forward. Returns (x_out, cls_attn).

    wqkv_bf / wproj_bf / bproj_f32 come from prepare_attention_params (cast once)."""
    B, N, C = x.shape
    assert C % num_heads == 0
    if bf16_exp is None:
        bf16_exp = _device_supports_bf16_eup()
    exp_dtype = jnp.bfloat16 if bf16_exp else jnp.float32
    q_chunk = min(q_chunk, N)

    # VMEM budget: double-buffered per-batch blocks, single-buffered weights, scratch,
    # plus the in-flight (q_chunk, N) score/prob temporaries.
    itemsize_x = jnp.dtype(x.dtype).itemsize
    working_set = (
        2 * (N * C * itemsize_x)       # x blocks (double-buffered, original dtype)
        + 2 * (N * C * itemsize_x)     # out blocks (double-buffered)
        + 2 * (N * 4)                  # cls blocks
        + C * 3 * C * 2                # w_qkv (bf16, single-buffered)
        + C * C * 2                    # w_proj (bf16, single-buffered)
        + C * 4                        # bias
        + N * 3 * C * 2                # qkv scratch (bf16)
        + N * C * 2                    # ctx scratch (bf16)
        + N * 4                        # cls scratch
        + 3 * q_chunk * N * 4          # score / prob temporaries
    )
    try:
        vmem_cap = int(getattr(pltpu.get_tpu_info(), "vmem_capacity_bytes", 64 << 20))
    except Exception:
        vmem_cap = 64 << 20            # conservative (v7x physical VMEM)
    vmem_limit = int(min(max(int(1.5 * working_set) + (4 << 20), 16 << 20),
                         vmem_cap - (2 << 20)))

    out, cls_full = pl.pallas_call(
        partial(_attention_kernel, num_heads=num_heads,
                q_chunk=q_chunk, exp_dtype=exp_dtype),
        out_shape=(
            jax.ShapeDtypeStruct((B, N, C), x.dtype),
            jax.ShapeDtypeStruct((B, 1, N), jnp.float32),
        ),
        grid_spec=pltpu.PrefetchScalarGridSpec(
            num_scalar_prefetch=0,
            grid=(B,),
            in_specs=[
                pl.BlockSpec((1, N, C), lambda b: (b, 0, 0)),
                # Grid-invariant weights: single-buffer them (halves their VMEM cost).
                pl.BlockSpec((C, 3 * C), lambda b: (0, 0),
                             pipeline_mode=pl.Buffered(1)),
                pl.BlockSpec((C, C), lambda b: (0, 0),
                             pipeline_mode=pl.Buffered(1)),
                pl.BlockSpec((1, C), lambda b: (0, 0),
                             pipeline_mode=pl.Buffered(1)),
            ],
            out_specs=[
                pl.BlockSpec((1, N, C), lambda b: (b, 0, 0)),
                pl.BlockSpec((1, 1, N), lambda b: (b, 0, 0)),
            ],
            scratch_shapes=[
                pltpu.VMEM((N, 3 * C), jnp.bfloat16),   # fused QKV activations
                pltpu.VMEM((N, C), jnp.bfloat16),       # head-concatenated context
                pltpu.VMEM((1, N), jnp.float32),        # CLS attention row accumulator
            ],
        ),
        compiler_params=pltpu.CompilerParams(
            dimension_semantics=("parallel",),
            vmem_limit_bytes=vmem_limit,
        ),
    )(x, wqkv_bf, wproj_bf, bproj_f32)

    # attn[:, :, 0, 1:].mean(axis=1): drop the CLS->CLS column (glue slicing only).
    cls_attn = cls_full[:, 0, 1:]
    return out, cls_attn


def _reference(x, w_qkv, w_proj, b_proj, num_heads):
    B, N, C = x.shape
    hd = C // num_heads
    qkv = (x @ w_qkv).reshape(B, N, 3, num_heads, hd).transpose(2, 0, 3, 1, 4)
    q, k, v = qkv[0], qkv[1], qkv[2]
    attn = jnp.einsum("bhnd,bhmd->bhnm", q, k) * (hd ** (-0.5))
    attn = jax.nn.softmax(attn, axis=-1)
    cls = attn[:, :, 0, 1:].mean(axis=1)
    o = jnp.einsum("bhnm,bhmd->bhnd", attn, v).transpose(0, 2, 1, 3).reshape(B, N, C)
    o = o @ w_proj + b_proj
    return o, cls


if __name__ == "__main__":
    B, N, C, H = 2, 8, 32, 4   # dim=32, num_heads=4 -> head_dim=8

    key = jax.random.PRNGKey(0)
    k1, k2, k3, k4 = jax.random.split(key, 4)
    x = jax.random.normal(k1, (B, N, C), dtype=jnp.float32)
    # Deterministic synthetic parameters (qkv_bias=False default -> no QKV bias).
    w_qkv = jax.random.normal(k2, (C, 3 * C), dtype=jnp.float32) * 0.05
    w_proj = jax.random.normal(k3, (C, C), dtype=jnp.float32) * 0.05
    b_proj = jax.random.normal(k4, (C,), dtype=jnp.float32) * 0.05

    # One-time weight prep (scale fold + bf16 cast), then the Pallas forward.
    wqkv_bf, wproj_bf, bproj_f32 = prepare_attention_params(w_qkv, w_proj, b_proj, H)
    out, cls_attn = attention_forward(x, wqkv_bf, wproj_bf, bproj_f32, H)
    jax.block_until_ready((out, cls_attn))

    ref_out, ref_cls = _reference(x, w_qkv, w_proj, b_proj, H)
    assert out.shape == (B, N, C) and cls_attn.shape == (B, N - 1)
    # bf16 matmul inputs + approx reciprocal (+ bf16 exp on v6e/v7x) -> relaxed tolerances.
    assert jnp.allclose(out, ref_out, atol=2e-2, rtol=2e-2)
    assert jnp.allclose(cls_attn, ref_cls, atol=2e-2, rtol=2e-2)

    print("KERNEL_OK")
</pallas_src>

<mosaic_0001>
module attributes {stable_mosaic.version = 11 : i64} {
  func.func @_attention_kernel(%arg0: i32, %arg1: memref<1x8x32xf32, #tpu.memory_space<vmem>>, %arg2: memref<32x96xbf16, #tpu.memory_space<vmem>>, %arg3: memref<32x32xbf16, #tpu.memory_space<vmem>>, %arg4: memref<1x32xf32, #tpu.memory_space<vmem>>, %arg5: memref<1x8x32xf32, #tpu.memory_space<vmem>>, %arg6: memref<1x1x8xf32, #tpu.memory_space<vmem>>, %arg7: memref<8x96xbf16, #tpu.memory_space<vmem>>, %arg8: memref<8x32xbf16, #tpu.memory_space<vmem>>, %arg9: memref<1x8xf32, #tpu.memory_space<vmem>>) attributes {dimension_semantics = [#tpu.dimension_semantics<parallel>], iteration_bounds = array<i64: 2>, scalar_prefetch = 0 : i64, scratch_operands = 3 : i64, tpu.core_type = #tpu.core_type<tc>, window_params = [{transform_indices = @transform_0, window_bounds = array<i64: 1, 8, 32>}, {pipeline_mode = #tpu.pipeline_mode<synchronous>, transform_indices = @transform_1, window_bounds = array<i64: 32, 96>}, {pipeline_mode = #tpu.pipeline_mode<synchronous>, transform_indices = @transform_2, window_bounds = array<i64: 32, 32>}, {pipeline_mode = #tpu.pipeline_mode<synchronous>, transform_indices = @transform_3, window_bounds = array<i64: 1, 32>}, {transform_indices = @transform_4, window_bounds = array<i64: 1, 8, 32>}, {transform_indices = @transform_5, window_bounds = array<i64: 1, 1, 8>}]} {
    %c0 = arith.constant 0 : index
    %c0_0 = arith.constant 0 : index
    %c0_1 = arith.constant 0 : index
    %0 = vector.load %arg1[%c0, %c0_0, %c0_1] : memref<1x8x32xf32, #tpu.memory_space<vmem>>, vector<1x8x32xf32>
    %1 = vector.shape_cast %0 : vector<1x8x32xf32> to vector<8x32xf32>
    %2 = arith.truncf %1 : vector<8x32xf32> to vector<8x32xbf16>
    %c0_2 = arith.constant 0 : index
    %c0_3 = arith.constant 0 : index
    %3 = vector.load %arg2[%c0_2, %c0_3] : memref<32x96xbf16, #tpu.memory_space<vmem>>, vector<32x96xbf16>
    %cst = arith.constant dense<0.000000e+00> : vector<8x96xf32>
    %4 = tpu.matmul %2, %3, %cst {dimension_numbers = #tpu.dot_dimension_numbers<[1], [0], [0], [1], [0, 0, 1, 1], [], []>} : vector<8x32xbf16>, vector<32x96xbf16>, vector<8x96xf32> -> vector<8x96xf32>
    %5 = arith.truncf %4 : vector<8x96xf32> to vector<8x96xbf16>
    %c0_4 = arith.constant 0 : index
    %c0_5 = arith.constant 0 : index
    %6 = vector.load %arg7[%c0_4, %c0_5] : memref<8x96xbf16, #tpu.memory_space<vmem>>, vector<8x96xbf16>
    tpu.vector_store %arg7[%c0_4, %c0_5], %5 {strides = array<i32>} : memref<8x96xbf16, #tpu.memory_space<vmem>>, vector<8x96xbf16>,
    %cst_6 = arith.constant 0.000000e+00 : f32
    %7 = vector.broadcast %cst_6 : f32 to vector<1x8xf32>
    %c0_7 = arith.constant 0 : index
    %c0_8 = arith.constant 0 : index
    %8 = vector.load %arg9[%c0_7, %c0_8] : memref<1x8xf32, #tpu.memory_space<vmem>>, vector<1x8xf32>
    tpu.vector_store %arg9[%c0_7, %c0_8], %7 {strides = array<i32>} : memref<1x8xf32, #tpu.memory_space<vmem>>, vector<1x8xf32>,
    %c0_9 = arith.constant 0 : index
    %c32 = arith.constant 32 : index
    %9 = vector.load %arg7[%c0_9, %c32] : memref<8x96xbf16, #tpu.memory_space<vmem>>, vector<8x8xbf16>
    %c0_10 = arith.constant 0 : index
    %c64 = arith.constant 64 : index
    %10 = vector.load %arg7[%c0_10, %c64] : memref<8x96xbf16, #tpu.memory_space<vmem>>, vector<8x8xbf16>
    %c0_11 = arith.constant 0 : index
    %c0_12 = arith.constant 0 : index
    %11 = vector.load %arg7[%c0_11, %c0_12] : memref<8x96xbf16, #tpu.memory_space<vmem>>, vector<8x8xbf16>
    %cst_13 = arith.constant dense<0.000000e+00> : vector<8x8xf32>
    %12 = tpu.matmul %11, %9, %cst_13 {dimension_numbers = #tpu.dot_dimension_numbers<[1], [1], [0], [0], [0, 0, 1, 0], [], []>} : vector<8x8xbf16>, vector<8x8xbf16>, vector<8x8xf32> -> vector<8x8xf32>
    %cst_14 = arith.constant dense<0xFF800000> : vector<8xf32>
    %13 = vector.multi_reduction <maximumf>, %12, %cst_14 [1] : vector<8x8xf32> to vector<8xf32>
    %14 = vector.shape_cast %13 : vector<8xf32> to vector<8x1xf32>
    %15 = vector.broadcast %14 : vector<8x1xf32> to vector<8x8xf32>
    %16 = arith.subf %12, %15 : vector<8x8xf32>
    %17 = math.exp %16 : vector<8x8xf32>
    %cst_15 = arith.constant dense<0.000000e+00> : vector<8xf32>
    %18 = vector.multi_reduction <add>, %17, %cst_15 [1] : vector<8x8xf32> to vector<8xf32>
    %19 = vector.shape_cast %18 : vector<8xf32> to vector<8x1xf32>
    %20 = arith.truncf %17 : vector<8x8xf32> to vector<8x8xbf16>
    %cst_16 = arith.constant dense<0.000000e+00> : vector<8x8xf32>
    %21 = tpu.matmul %20, %10, %cst_16 {dimension_numbers = #tpu.dot_dimension_numbers<[1], [0], [0], [1], [0, 0, 1, 1], [], []>} : vector<8x8xbf16>, vector<8x8xbf16>, vector<8x8xf32> -> vector<8x8xf32>
    %22 = tpu.reciprocal %19 {approx = true} : vector<8x1xf32> -> vector<8x1xf32>
    %23 = vector.broadcast %22 : vector<8x1xf32> to vector<8x8xf32>
    %24 = arith.mulf %21, %23 : vector<8x8xf32>
    %25 = arith.truncf %24 : vector<8x8xf32> to vector<8x8xbf16>
    %c0_17 = arith.constant 0 : index
    %c0_18 = arith.constant 0 : index
    %26 = vector.load %arg8[%c0_17, %c0_18] : memref<8x32xbf16, #tpu.memory_space<vmem>>, vector<8x8xbf16>
    tpu.vector_store %arg8[%c0_17, %c0_18], %25 {strides = array<i32>} : memref<8x32xbf16, #tpu.memory_space<vmem>>, vector<8x8xbf16>,
    %c0_19 = arith.constant 0 : index
    %c0_20 = arith.constant 0 : index
    %27 = vector.load %arg9[%c0_19, %c0_20] : memref<1x8xf32, #tpu.memory_space<vmem>>, vector<1x8xf32>
    %28 = vector.extract_strided_slice %17 {offsets = [0, 0], sizes = [1, 8], strides = [1, 1]} : vector<8x8xf32> to vector<1x8xf32>
    %29 = vector.extract_strided_slice %19 {offsets = [0, 0], sizes = [1, 1], strides = [1, 1]} : vector<8x1xf32> to vector<1x1xf32>
    %30 = vector.broadcast %29 : vector<1x1xf32> to vector<1x8xf32>
    %31 = arith.divf %28, %30 : vector<1x8xf32>
    %32 = arith.addf %27, %31 : vector<1x8xf32>
    %c0_21 = arith.constant 0 : index
    %c0_22 = arith.constant 0 : index
    %33 = vector.load %arg9[%c0_21, %c0_22] : memref<1x8xf32, #tpu.memory_space<vmem>>, vector<1x8xf32>
    tpu.vector_store %arg9[%c0_21, %c0_22], %32 {strides = array<i32>} : memref<1x8xf32, #tpu.memory_space<vmem>>, vector<1x8xf32>,
    %c0_23 = arith.constant 0 : index
    %c40 = arith.constant 40 : index
    %34 = vector.load %arg7[%c0_23, %c40] : memref<8x96xbf16, #tpu.memory_space<vmem>>, vector<8x8xbf16>
    %c0_24 = arith.constant 0 : index
    %c72 = arith.constant 72 : index
    %35 = vector.load %arg7[%c0_24, %c72] : memref<8x96xbf16, #tpu.memory_space<vmem>>, vector<8x8xbf16>
    %c0_25 = arith.constant 0 : index
    %c8 = arith.constant 8 : index
    %36 = vector.load %arg7[%c0_25, %c8] : memref<8x96xbf16, #tpu.memory_space<vmem>>, vector<8x8xbf16>
    %cst_26 = arith.constant dense<0.000000e+00> : vector<8x8xf32>
    %37 = tpu.matmul %36, %34, %cst_26 {dimension_numbers = #tpu.dot_dimension_numbers<[1], [1], [0], [0], [0, 0, 1, 0], [], []>} : vector<8x8xbf16>, vector<8x8xbf16>, vector<8x8xf32> -> vector<8x8xf32>
    %cst_27 = arith.constant dense<0xFF800000> : vector<8xf32>
    %38 = vector.multi_reduction <maximumf>, %37, %cst_27 [1] : vector<8x8xf32> to vector<8xf32>
    %39 = vector.shape_cast %38 : vector<8xf32> to vector<8x1xf32>
    %40 = vector.broadcast %39 : vector<8x1xf32> to vector<8x8xf32>
    %41 = arith.subf %37, %40 : vector<8x8xf32>
    %42 = math.exp %41 : vector<8x8xf32>
    %cst_28 = arith.constant dense<0.000000e+00> : vector<8xf32>
    %43 = vector.multi_reduction <add>, %42, %cst_28 [1] : vector<8x8xf32> to vector<8xf32>
    %44 = vector.shape_cast %43 : vector<8xf32> to vector<8x1xf32>
    %45 = arith.truncf %42 : vector<8x8xf32> to vector<8x8xbf16>
    %cst_29 = arith.constant dense<0.000000e+00> : vector<8x8xf32>
    %46 = tpu.matmul %45, %35, %cst_29 {dimension_numbers = #tpu.dot_dimension_numbers<[1], [0], [0], [1], [0, 0, 1, 1], [], []>} : vector<8x8xbf16>, vector<8x8xbf16>, vector<8x8xf32> -> vector<8x8xf32>
    %47 = tpu.reciprocal %44 {approx = true} : vector<8x1xf32> -> vector<8x1xf32>
    %48 = vector.broadcast %47 : vector<8x1xf32> to vector<8x8xf32>
    %49 = arith.mulf %46, %48 : vector<8x8xf32>
    %50 = arith.truncf %49 : vector<8x8xf32> to vector<8x8xbf16>
    %c0_30 = arith.constant 0 : index
    %c8_31 = arith.constant 8 : index
    %51 = vector.load %arg8[%c0_30, %c8_31] : memref<8x32xbf16, #tpu.memory_space<vmem>>, vector<8x8xbf16>
    tpu.vector_store %arg8[%c0_30, %c8_31], %50 {strides = array<i32>} : memref<8x32xbf16, #tpu.memory_space<vmem>>, vector<8x8xbf16>,
    %c0_32 = arith.constant 0 : index
    %c0_33 = arith.constant 0 : index
    %52 = vector.load %arg9[%c0_32, %c0_33] : memref<1x8xf32, #tpu.memory_space<vmem>>, vector<1x8xf32>
    %53 = vector.extract_strided_slice %42 {offsets = [0, 0], sizes = [1, 8], strides = [1, 1]} : vector<8x8xf32> to vector<1x8xf32>
    %54 = vector.extract_strided_slice %44 {offsets = [0, 0], sizes = [1, 1], strides = [1, 1]} : vector<8x1xf32> to vector<1x1xf32>
    %55 = vector.broadcast %54 : vector<1x1xf32> to vector<1x8xf32>
    %56 = arith.divf %53, %55 : vector<1x8xf32>
    %57 = arith.addf %52, %56 : vector<1x8xf32>
    %c0_34 = arith.constant 0 : index
    %c0_35 = arith.constant 0 : index
    %58 = vector.load %arg9[%c0_34, %c0_35] : memref<1x8xf32, #tpu.memory_space<vmem>>, vector<1x8xf32>
    tpu.vector_store %arg9[%c0_34, %c0_35], %57 {strides = array<i32>} : memref<1x8xf32, #tpu.memory_space<vmem>>, vector<1x8xf32>,
    %c0_36 = arith.constant 0 : index
    %c48 = arith.constant 48 : index
    %59 = vector.load %arg7[%c0_36, %c48] : memref<8x96xbf16, #tpu.memory_space<vmem>>, vector<8x8xbf16>
    %c0_37 = arith.constant 0 : index
    %c80 = arith.constant 80 : index
    %60 = vector.load %arg7[%c0_37, %c80] : memref<8x96xbf16, #tpu.memory_space<vmem>>, vector<8x8xbf16>
    %c0_38 = arith.constant 0 : index
    %c16 = arith.constant 16 : index
    %61 = vector.load %arg7[%c0_38, %c16] : memref<8x96xbf16, #tpu.memory_space<vmem>>, vector<8x8xbf16>
    %cst_39 = arith.constant dense<0.000000e+00> : vector<8x8xf32>
    %62 = tpu.matmul %61, %59, %cst_39 {dimension_numbers = #tpu.dot_dimension_numbers<[1], [1], [0], [0], [0, 0, 1, 0], [], []>} : vector<8x8xbf16>, vector<8x8xbf16>, vector<8x8xf32> -> vector<8x8xf32>
    %cst_40 = arith.constant dense<0xFF800000> : vector<8xf32>
    %63 = vector.multi_reduction <maximumf>, %62, %cst_40 [1] : vector<8x8xf32> to vector<8xf32>
    %64 = vector.shape_cast %63 : vector<8xf32> to vector<8x1xf32>
    %65 = vector.broadcast %64 : vector<8x1xf32> to vector<8x8xf32>
    %66 = arith.subf %62, %65 : vector<8x8xf32>
    %67 = math.exp %66 : vector<8x8xf32>
    %cst_41 = arith.constant dense<0.000000e+00> : vector<8xf32>
    %68 = vector.multi_reduction <add>, %67, %cst_41 [1] : vector<8x8xf32> to vector<8xf32>
    %69 = vector.shape_cast %68 : vector<8xf32> to vector<8x1xf32>
    %70 = arith.truncf %67 : vector<8x8xf32> to vector<8x8xbf16>
    %cst_42 = arith.constant dense<0.000000e+00> : vector<8x8xf32>
    %71 = tpu.matmul %70, %60, %cst_42 {dimension_numbers = #tpu.dot_dimension_numbers<[1], [0], [0], [1], [0, 0, 1, 1], [], []>} : vector<8x8xbf16>, vector<8x8xbf16>, vector<8x8xf32> -> vector<8x8xf32>
    %72 = tpu.reciprocal %69 {approx = true} : vector<8x1xf32> -> vector<8x1xf32>
    %73 = vector.broadcast %72 : vector<8x1xf32> to vector<8x8xf32>
    %74 = arith.mulf %71, %73 : vector<8x8xf32>
    %75 = arith.truncf %74 : vector<8x8xf32> to vector<8x8xbf16>
    %c0_43 = arith.constant 0 : index
    %c16_44 = arith.constant 16 : index
    %76 = vector.load %arg8[%c0_43, %c16_44] : memref<8x32xbf16, #tpu.memory_space<vmem>>, vector<8x8xbf16>
    tpu.vector_store %arg8[%c0_43, %c16_44], %75 {strides = array<i32>} : memref<8x32xbf16, #tpu.memory_space<vmem>>, vector<8x8xbf16>,
    %c0_45 = arith.constant 0 : index
    %c0_46 = arith.constant 0 : index
    %77 = vector.load %arg9[%c0_45, %c0_46] : memref<1x8xf32, #tpu.memory_space<vmem>>, vector<1x8xf32>
    %78 = vector.extract_strided_slice %67 {offsets = [0, 0], sizes = [1, 8], strides = [1, 1]} : vector<8x8xf32> to vector<1x8xf32>
    %79 = vector.extract_strided_slice %69 {offsets = [0, 0], sizes = [1, 1], strides = [1, 1]} : vector<8x1xf32> to vector<1x1xf32>
    %80 = vector.broadcast %79 : vector<1x1xf32> to vector<1x8xf32>
    %81 = arith.divf %78, %80 : vector<1x8xf32>
    %82 = arith.addf %77, %81 : vector<1x8xf32>
    %c0_47 = arith.constant 0 : index
    %c0_48 = arith.constant 0 : index
    %83 = vector.load %arg9[%c0_47, %c0_48] : memref<1x8xf32, #tpu.memory_space<vmem>>, vector<1x8xf32>
    tpu.vector_store %arg9[%c0_47, %c0_48], %82 {strides = array<i32>} : memref<1x8xf32, #tpu.memory_space<vmem>>, vector<1x8xf32>,
    %c0_49 = arith.constant 0 : index
    %c56 = arith.constant 56 : index
    %84 = vector.load %arg7[%c0_49, %c56] : memref<8x96xbf16, #tpu.memory_space<vmem>>, vector<8x8xbf16>
    %c0_50 = arith.constant 0 : index
    %c88 = arith.constant 88 : index
    %85 = vector.load %arg7[%c0_50, %c88] : memref<8x96xbf16, #tpu.memory_space<vmem>>, vector<8x8xbf16>
    %c0_51 = arith.constant 0 : index
    %c24 = arith.constant 24 : index
    %86 = vector.load %arg7[%c0_51, %c24] : memref<8x96xbf16, #tpu.memory_space<vmem>>, vector<8x8xbf16>
    %cst_52 = arith.constant dense<0.000000e+00> : vector<8x8xf32>
    %87 = tpu.matmul %86, %84, %cst_52 {dimension_numbers = #tpu.dot_dimension_numbers<[1], [1], [0], [0], [0, 0, 1, 0], [], []>} : vector<8x8xbf16>, vector<8x8xbf16>, vector<8x8xf32> -> vector<8x8xf32>
    %cst_53 = arith.constant dense<0xFF800000> : vector<8xf32>
    %88 = vector.multi_reduction <maximumf>, %87, %cst_53 [1] : vector<8x8xf32> to vector<8xf32>
    %89 = vector.shape_cast %88 : vector<8xf32> to vector<8x1xf32>
    %90 = vector.broadcast %89 : vector<8x1xf32> to vector<8x8xf32>
    %91 = arith.subf %87, %90 : vector<8x8xf32>
    %92 = math.exp %91 : vector<8x8xf32>
    %cst_54 = arith.constant dense<0.000000e+00> : vector<8xf32>
    %93 = vector.multi_reduction <add>, %92, %cst_54 [1] : vector<8x8xf32> to vector<8xf32>
    %94 = vector.shape_cast %93 : vector<8xf32> to vector<8x1xf32>
    %95 = arith.truncf %92 : vector<8x8xf32> to vector<8x8xbf16>
    %cst_55 = arith.constant dense<0.000000e+00> : vector<8x8xf32>
    %96 = tpu.matmul %95, %85, %cst_55 {dimension_numbers = #tpu.dot_dimension_numbers<[1], [0], [0], [1], [0, 0, 1, 1], [], []>} : vector<8x8xbf16>, vector<8x8xbf16>, vector<8x8xf32> -> vector<8x8xf32>
    %97 = tpu.reciprocal %94 {approx = true} : vector<8x1xf32> -> vector<8x1xf32>
    %98 = vector.broadcast %97 : vector<8x1xf32> to vector<8x8xf32>
    %99 = arith.mulf %96, %98 : vector<8x8xf32>
    %100 = arith.truncf %99 : vector<8x8xf32> to vector<8x8xbf16>
    %c0_56 = arith.constant 0 : index
    %c24_57 = arith.constant 24 : index
    %101 = vector.load %arg8[%c0_56, %c24_57] : memref<8x32xbf16, #tpu.memory_space<vmem>>, vector<8x8xbf16>
    tpu.vector_store %arg8[%c0_56, %c24_57], %100 {strides = array<i32>} : memref<8x32xbf16, #tpu.memory_space<vmem>>, vector<8x8xbf16>,
    %c0_58 = arith.constant 0 : index
    %c0_59 = arith.constant 0 : index
    %102 = vector.load %arg9[%c0_58, %c0_59] : memref<1x8xf32, #tpu.memory_space<vmem>>, vector<1x8xf32>
    %103 = vector.extract_strided_slice %92 {offsets = [0, 0], sizes = [1, 8], strides = [1, 1]} : vector<8x8xf32> to vector<1x8xf32>
    %104 = vector.extract_strided_slice %94 {offsets = [0, 0], sizes = [1, 1], strides = [1, 1]} : vector<8x1xf32> to vector<1x1xf32>
    %105 = vector.broadcast %104 : vector<1x1xf32> to vector<1x8xf32>
    %106 = arith.divf %103, %105 : vector<1x8xf32>
    %107 = arith.addf %102, %106 : vector<1x8xf32>
    %c0_60 = arith.constant 0 : index
    %c0_61 = arith.constant 0 : index
    %108 = vector.load %arg9[%c0_60, %c0_61] : memref<1x8xf32, #tpu.memory_space<vmem>>, vector<1x8xf32>
    tpu.vector_store %arg9[%c0_60, %c0_61], %107 {strides = array<i32>} : memref<1x8xf32, #tpu.memory_space<vmem>>, vector<1x8xf32>,
    %c0_62 = arith.constant 0 : index
    %c0_63 = arith.constant 0 : index
    %109 = vector.load %arg8[%c0_62, %c0_63] : memref<8x32xbf16, #tpu.memory_space<vmem>>, vector<8x32xbf16>
    %c0_64 = arith.constant 0 : index
    %c0_65 = arith.constant 0 : index
    %110 = vector.load %arg3[%c0_64, %c0_65] : memref<32x32xbf16, #tpu.memory_space<vmem>>, vector<32x32xbf16>
    %cst_66 = arith.constant dense<0.000000e+00> : vector<8x32xf32>
    %111 = tpu.matmul %109, %110, %cst_66 {dimension_numbers = #tpu.dot_dimension_numbers<[1], [0], [0], [1], [0, 0, 1, 1], [], []>} : vector<8x32xbf16>, vector<32x32xbf16>, vector<8x32xf32> -> vector<8x32xf32>
    %c0_67 = arith.constant 0 : index
    %c0_68 = arith.constant 0 : index
    %112 = vector.load %arg4[%c0_67, %c0_68] : memref<1x32xf32, #tpu.memory_space<vmem>>, vector<1x32xf32>
    %113 = vector.broadcast %112 : vector<1x32xf32> to vector<8x32xf32>
    %114 = arith.addf %111, %113 : vector<8x32xf32>
    %c0_69 = arith.constant 0 : index
    %c0_70 = arith.constant 0 : index
    %c0_71 = arith.constant 0 : index
    %115 = vector.load %arg5[%c0_69, %c0_70, %c0_71] : memref<1x8x32xf32, #tpu.memory_space<vmem>>, vector<1x8x32xf32>
    %116 = vector.shape_cast %115 : vector<1x8x32xf32> to vector<8x32xf32>
    %117 = vector.shape_cast %114 : vector<8x32xf32> to vector<1x8x32xf32>
    tpu.vector_store %arg5[%c0_69, %c0_70, %c0_71], %117 {strides = array<i32>} : memref<1x8x32xf32, #tpu.memory_space<vmem>>, vector<1x8x32xf32>,
    %c0_72 = arith.constant 0 : index
    %c0_73 = arith.constant 0 : index
    %118 = vector.load %arg9[%c0_72, %c0_73] : memref<1x8xf32, #tpu.memory_space<vmem>>, vector<1x8xf32>
    %cst_74 = arith.constant 2.500000e-01 : f32
    %119 = vector.broadcast %cst_74 : f32 to vector<1x8xf32>
    %120 = arith.mulf %118, %119 : vector<1x8xf32>
    %c0_75 = arith.constant 0 : index
    %c0_76 = arith.constant 0 : index
    %c0_77 = arith.constant 0 : index
    %121 = vector.load %arg6[%c0_75, %c0_76, %c0_77] : memref<1x1x8xf32, #tpu.memory_space<vmem>>, vector<1x1x8xf32>
    %122 = vector.shape_cast %121 : vector<1x1x8xf32> to vector<1x8xf32>
    %123 = vector.shape_cast %120 : vector<1x8xf32> to vector<1x1x8xf32>
    tpu.vector_store %arg6[%c0_75, %c0_76, %c0_77], %123 {strides = array<i32>} : memref<1x1x8xf32, #tpu.memory_space<vmem>>, vector<1x1x8xf32>,
    return
  }
  func.func @transform_0(%arg0: i32) -> (i32, i32, i32) {
    %c0_i32 = arith.constant 0 : i32
    %c0_i32_0 = arith.constant 0 : i32
    %c0_i32_1 = arith.constant 0 : i32
    return %arg0, %c0_i32, %c0_i32_0 : i32, i32, i32
  }
  func.func @transform_1(%arg0: i32) -> (i32, i32) {
    %c0_i32 = arith.constant 0 : i32
    %c0_i32_0 = arith.constant 0 : i32
    %c0_i32_1 = arith.constant 0 : i32
    return %c0_i32, %c0_i32_0 : i32, i32
  }
  func.func @transform_2(%arg0: i32) -> (i32, i32) {
    %c0_i32 = arith.constant 0 : i32
    %c0_i32_0 = arith.constant 0 : i32
    %c0_i32_1 = arith.constant 0 : i32
    return %c0_i32, %c0_i32_0 : i32, i32
  }
  func.func @transform_3(%arg0: i32) -> (i32, i32) {
    %c0_i32 = arith.constant 0 : i32
    %c0_i32_0 = arith.constant 0 : i32
    %c0_i32_1 = arith.constant 0 : i32
    return %c0_i32, %c0_i32_0 : i32, i32
  }
  func.func @transform_4(%arg0: i32) -> (i32, i32, i32) {
    %c0_i32 = arith.constant 0 : i32
    %c0_i32_0 = arith.constant 0 : i32
    %c0_i32_1 = arith.constant 0 : i32
    return %arg0, %c0_i32, %c0_i32_0 : i32, i32, i32
  }
  func.func @transform_5(%arg0: i32) -> (i32, i32, i32) {
    %c0_i32 = arith.constant 0 : i32
    %c0_i32_0 = arith.constant 0 : i32
    %c0_i32_1 = arith.constant 0 : i32
    return %arg0, %c0_i32, %c0_i32_0 : i32, i32, i32
  }
}

</mosaic_0001>

<llo_original>
// kernel: tpu_custom_call.1
$region0: #{tpu_custom_call.1}
  #allocation0 [shape = 'u32[]', space=smem, size = 0x4, offset = 0x4, fixed_abs, tag = 'smem constant byte address 0x4 - core index']
  #allocation1 [shape = 'u32[144,128]{1,0:T(1,128)}', space=vmem, size = 0x12000, scoped, tag = 'internal scratch']
  #allocation2 [shape = 'bf16[8,96]{1,0:T(8,128)(2,1)}', space=vmem, size = 0x800, scoped, tag = 'scratch operand']
  #allocation3 [shape = 'bf16[8,32]{1,0:T(8,128)(2,1)}', space=vmem, size = 0x800, scoped, tag = 'scratch operand']
  #allocation4 [shape = 'f32[1,8]{1,0:T(1,128)}', space=vmem, size = 0x200, scoped, tag = 'scratch operand']
  %s0 = inlined_call_operand.hbm [shape: f32[2,8,32], index: 0, kind: input, shape index: {}]
  %s1 = inlined_call_operand.hbm [shape: bf16[32,96], index: 1, kind: input, shape index: {}]
  %s2 = inlined_call_operand.hbm [shape: bf16[32,32], index: 2, kind: input, shape index: {}]
  %s3 = inlined_call_operand.vmem [shape: f32[1,32], index: 3, kind: input, shape index: {}]
  %s4 = inlined_call_operand.hbm [shape: f32[2,8,32], index: 4, kind: output, shape index: {0}]
  %s5 = inlined_call_operand.hbm [shape: f32[2,1,8], index: 5, kind: output, shape index: {1}]
  %6 = xla_tuple %s4, %s5
  %s7 = sld [smem:[#allocation0]]
  $region69: #{tpu_custom_call.1} parent=0
    _
  %s9 = ssub.s32 1, %s7
  %s10 = scalar_select 0, %s9, %s7
  $region1: #{tpu_custom_call.1} parent=0
    #allocation5 [shape = 'u8[8192]{0}', space=vmem, size = 0x2000, scoped, tag = 'input window, operand 0']
    #allocation6 [shape = 's32[2]{0}', space=sflag, size = 0x8, scoped, tag = 'scoped memory for tpu_custom_call.1']
    #allocation7 [shape = 's32[2]{0}', space=sflag, size = 0x8, scoped, tag = 'scoped memory for tpu_custom_call.1']
    #allocation8 [shape = 'u8[8192]{0}', space=vmem, size = 0x2000, scoped, tag = 'input window, operand 1, single buffered']
    #allocation9 [shape = 's32[1]{0}', space=sflag, size = 0x4, scoped, tag = 'scoped memory for tpu_custom_call.1']
    #allocation10 [shape = 'u8[8192]{0}', space=vmem, size = 0x2000, scoped, tag = 'input window, operand 2, single buffered']
    #allocation11 [shape = 'u8[8192]{0}', space=vmem, size = 0x2000, scoped, tag = 'output window, operand 0']
    #allocation12 [shape = 'u8[1024]{0}', space=vmem, size = 0x400, scoped, tag = 'output window, operand 1']
    #allocation13 [shape = 's32[2]{0}', space=sflag, size = 0x8, scoped, tag = 'scoped memory for tpu_custom_call.1']
    %11 = vsyncpa [#allocation6], 0
    %s12 = scalar_lea.sflag [#allocation6], 1
    %13 = vsyncpa %s12, 0
    %14 = vsyncpa [#allocation9], 0
    %15 = vsyncpa [#allocation7], 0
    %s16 = scalar_lea.sflag [#allocation7], 1
    %17 = vsyncpa %s16, 0
    %18 = vsyncpa [#allocation13], 0
    %s19 = scalar_lea.sflag [#allocation13], 1
    %20 = vsyncpa %s19, 0
    loop: start=0, step=1, limit=4
    $region2: #{tpu_custom_call.1} parent=1 // loop_pre_header
      _
    $region3: #{tpu_custom_call.1} parent=1 // loop_header
      %s22 = sphi 0, %s26
      %p23 = scmp.ge.s32.totalorder %s22, 4
      %s32 = sphi 0, %s34
      %s35 = sphi 0, %s32
      %s36 = sphi 0, %s35
      %s52 = sphi 0, %s36
      %s56 = sphi 0, %s56
      %s58 = sphi 0, %s56
      %s59 = sphi 0, %s58
      %s73 = sphi 0, %s59
      %s77 = sphi 0, %s77
      %s79 = sphi 0, %s77
      %s80 = sphi 0, %s79
      %s94 = sphi 0, %s80
      %s98 = sphi 0, %s98
      %s100 = sphi 0, %s98
      %s101 = sphi 0, %s100
      %s115 = sphi 0, %s101
      %s121 = sphi 0, %s123
      %s124 = sphi 0, %s121
      %s125 = sphi 0, %s124
      %s141 = sphi 0, %s125
      %s147 = sphi 0, %s149
      %s150 = sphi 0, %s147
      %s151 = sphi 0, %s150
      %s167 = sphi 0, %s151
    $region4: #{tpu_custom_call.1} parent=1 // loop_header_branch
      %25 = sbr.rel (%p23) target = $region8
    $region5: #{tpu_custom_call.1} parent=1 // loop_body
      %s27 = ssub.s32 %s22, 1
      %s28 = ssub.s32 %s22, 2
      %s29 = sadd.s32 %s22, 1
      %s30 = ssub.s32 %s22, %s29
      %p31 = scmp.eq.s32.totalorder %s30, 0
      %s33 = sadd.s32 %s32, 1
      %s34 = scalar_select %p31, %s32, %s33
      %p37 = pneg %p31
      %p38 = scmp.eq.s32.totalorder %s22, 1
      %p39 = por %p37, %p38
      %p40 = scmp.ne.s32.totalorder %s32, %s35
      %p41 = scmp.eq.s32.totalorder %s22, 0
      %p42 = por %p40, %p41
      %p43 = scmp.ne.s32.totalorder %s32, %s35
      %p44 = scmp.eq.s32.totalorder %s27, 1
      %p45 = por %p43, %p44
      %p46 = scmp.ne.s32.totalorder %s35, %s36
      %p47 = scmp.eq.s32.totalorder %s27, 0
      %p48 = por %p46, %p47
      %p49 = scmp.ne.s32.totalorder %s35, %s36
      %p50 = scmp.eq.s32.totalorder %s28, 1
      %p51 = por %p49, %p50
      %p53 = scmp.ne.s32.totalorder %s36, %s52
      %p54 = scmp.eq.s32.totalorder %s28, 0
      %p55 = por %p53, %p54
      %s57 = sadd.s32 %s56, 1
      %p60 = scmp.eq.s32.totalorder %s22, 1
      %p61 = scmp.ne.s32.totalorder %s56, %s58
      %p62 = scmp.eq.s32.totalorder %s22, 0
      %p63 = por %p61, %p62
      %p64 = scmp.ne.s32.totalorder %s56, %s58
      %p65 = scmp.eq.s32.totalorder %s27, 1
      %p66 = por %p64, %p65
      %p67 = scmp.ne.s32.totalorder %s58, %s59
      %p68 = scmp.eq.s32.totalorder %s27, 0
      %p69 = por %p67, %p68
      %p70 = scmp.ne.s32.totalorder %s58, %s59
      %p71 = scmp.eq.s32.totalorder %s28, 1
      %p72 = por %p70, %p71
      %p74 = scmp.ne.s32.totalorder %s59, %s73
      %p75 = scmp.eq.s32.totalorder %s28, 0
      %p76 = por %p74, %p75
      %s78 = sadd.s32 %s77, 1
      %p81 = scmp.eq.s32.totalorder %s22, 1
      %p82 = scmp.ne.s32.totalorder %s77, %s79
      %p83 = scmp.eq.s32.totalorder %s22, 0
      %p84 = por %p82, %p83
      %p85 = scmp.ne.s32.totalorder %s77, %s79
      %p86 = scmp.eq.s32.totalorder %s27, 1
      %p87 = por %p85, %p86
      %p88 = scmp.ne.s32.totalorder %s79, %s80
      %p89 = scmp.eq.s32.totalorder %s27, 0
      %p90 = por %p88, %p89
      %p91 = scmp.ne.s32.totalorder %s79, %s80
      %p92 = scmp.eq.s32.totalorder %s28, 1
      %p93 = por %p91, %p92
      %p95 = scmp.ne.s32.totalorder %s80, %s94
      %p96 = scmp.eq.s32.totalorder %s28, 0
      %p97 = por %p95, %p96
      %s99 = sadd.s32 %s98, 1
      %p102 = scmp.eq.s32.totalorder %s22, 1
      %p103 = scmp.ne.s32.totalorder %s98, %s100
      %p104 = scmp.eq.s32.totalorder %s22, 0
      %p105 = por %p103, %p104
      %p106 = scmp.ne.s32.totalorder %s98, %s100
      %p107 = scmp.eq.s32.totalorder %s27, 1
      %p108 = por %p106, %p107
      %p109 = scmp.ne.s32.totalorder %s100, %s101
      %p110 = scmp.eq.s32.totalorder %s27, 0
      %p111 = por %p109, %p110
      %p112 = scmp.ne.s32.totalorder %s100, %s101
      %p113 = scmp.eq.s32.totalorder %s28, 1
      %p114 = por %p112, %p113
      %p116 = scmp.ne.s32.totalorder %s101, %s115
      %p117 = scmp.eq.s32.totalorder %s28, 0
      %p118 = por %p116, %p117
      %s119 = ssub.s32 %s22, %s29
      %p120 = scmp.eq.s32.totalorder %s119, 0
      %s122 = sadd.s32 %s121, 1
      %s123 = scalar_select %p120, %s121, %s122
      %p126 = pneg %p120
      %p127 = scmp.eq.s32.totalorder %s22, 1
      %p128 = por %p126, %p127
      %p129 = scmp.ne.s32.totalorder %s121, %s124
      %p130 = scmp.eq.s32.totalorder %s22, 0
      %p131 = por %p129, %p130
      %p132 = scmp.ne.s32.totalorder %s121, %s124
      %p133 = scmp.eq.s32.totalorder %s27, 1
      %p134 = por %p132, %p133
      %p135 = scmp.ne.s32.totalorder %s124, %s125
      %p136 = scmp.eq.s32.totalorder %s27, 0
      %p137 = por %p135, %p136
      %p138 = scmp.ne.s32.totalorder %s124, %s125
      %p139 = scmp.eq.s32.totalorder %s28, 1
      %p140 = por %p138, %p139
      %p142 = scmp.ne.s32.totalorder %s125, %s141
      %p143 = scmp.eq.s32.totalorder %s28, 0
      %p144 = por %p142, %p143
      %s145 = ssub.s32 %s22, %s29
      %p146 = scmp.eq.s32.totalorder %s145, 0
      %s148 = sadd.s32 %s147, 1
      %s149 = scalar_select %p146, %s147, %s148
      %p152 = pneg %p146
      %p153 = scmp.eq.s32.totalorder %s22, 1
      %p154 = por %p152, %p153
      %p155 = scmp.ne.s32.totalorder %s147, %s150
      %p156 = scmp.eq.s32.totalorder %s22, 0
      %p157 = por %p155, %p156
      %p158 = scmp.ne.s32.totalorder %s147, %s150
      %p159 = scmp.eq.s32.totalorder %s27, 1
      %p160 = por %p158, %p159
      %p161 = scmp.ne.s32.totalorder %s150, %s151
      %p162 = scmp.eq.s32.totalorder %s27, 0
      %p163 = por %p161, %p162
      %p164 = scmp.ne.s32.totalorder %s150, %s151
      %p165 = scmp.eq.s32.totalorder %s28, 1
      %p166 = por %p164, %p165
      %p168 = scmp.ne.s32.totalorder %s151, %s167
      %p169 = scmp.eq.s32.totalorder %s28, 0
      %p170 = por %p168, %p169
      %p171 = scmp.le.s32.totalorder 1, %s22
      %p172 = scmp.lt.s32.totalorder %s22, 3
      %p173 = pnand %p171, %p172
      %p174 = pneg %p173
      // Predicated region
      $region9: #{tpu_custom_call.1} parent=5 // pred_check
        _
      $region10: #{tpu_custom_call.1} parent=5 // pred_check_branch
        %176 = sbr.rel (%p173) target = $region12
      $region11: #{tpu_custom_call.1} parent=5 // pred_region
        %s177 = ssub.s32 %s22, 1
        // Predicated region
        $region13: #{tpu_custom_call.1} parent=11 // pred_check
          %p178 = pneg %p69
        $region14: #{tpu_custom_call.1} parent=11 // pred_check_branch
          %180 = sbr.rel (%p178) target = $region16
        $region15: #{tpu_custom_call.1} parent=11 // pred_region
          %s182 = ssub.s32 256, 256
          %183 = vsyncadd [#allocation9], %s182
          %s184 = sshll.u32 [#allocation8], 4
          %s185 = int_to_ptr.vmem [resolvable:$true] %s184
          %190 = dma.hbm_to_vmem [thread:$0]  %s1, 256, %s185, [#allocation9], 64, 64, 4
        $region16: #{tpu_custom_call.1} parent=11 // pred_fallthru
          _
        // Predicated region
        $region17: #{tpu_custom_call.1} parent=11 // pred_check
          %p191 = pneg %p90
        $region18: #{tpu_custom_call.1} parent=11 // pred_check_branch
          %193 = sbr.rel (%p191) target = $region20
        $region19: #{tpu_custom_call.1} parent=11 // pred_region
          %s195 = ssub.s32 256, 256
          %196 = vsyncadd [#allocation9], %s195
          %s197 = sshll.u32 [#allocation10], 4
          %s198 = int_to_ptr.vmem [resolvable:$true] %s197
          %203 = dma.hbm_to_vmem [thread:$0]  %s2, 256, %s198, [#allocation9], 64, 64, 4
        $region20: #{tpu_custom_call.1} parent=11 // pred_fallthru
          _
        // Predicated region
        $region21: #{tpu_custom_call.1} parent=11 // pred_check
          %p204 = pneg %p111
        $region22: #{tpu_custom_call.1} parent=11 // pred_check_branch
          %206 = sbr.rel (%p204) target = $region24
        $region23: #{tpu_custom_call.1} parent=11 // pred_region
          _
        $region24: #{tpu_custom_call.1} parent=11 // pred_fallthru
          _
      $region12: #{tpu_custom_call.1} parent=5 // pred_fallthru
        _
      %p207 = scmp.lt.s32.totalorder %s22, 2
      // Predicated region
      $region25: #{tpu_custom_call.1} parent=5 // pred_check
        %p208 = pneg %p207
      $region26: #{tpu_custom_call.1} parent=5 // pred_check_branch
        %210 = sbr.rel (%p208) target = $region28
      $region27: #{tpu_custom_call.1} parent=5 // pred_region
        // Predicated region
        $region29: #{tpu_custom_call.1} parent=27 // pred_check
          %p211 = pneg %p42
        $region30: #{tpu_custom_call.1} parent=27 // pred_check_branch
          %213 = sbr.rel (%p211) target = $region32
        $region31: #{tpu_custom_call.1} parent=27 // pred_region
          %s214 = sand.u32 %s32, 1
          %s215 = scalar_lea.sflag [#allocation6], %s214
          %s216 = sand.u32 %s32, 1
          %s217 = smul.addr %s216, 8
          %s218 = scalar_lea.vmem [#allocation5], %s217
          %s220 = ssub.s32 128, 128
          %221 = vsyncadd %s215, %s220
          %s222 = smul.addr %s22, 128
          %s223 = scalar_lea.hbm %s0, %s222
          %s225 = sshll.u32 %s218, 4
          %s226 = int_to_ptr.vmem [resolvable:$true] %s225
          %228 = dma.hbm_to_vmem [thread:$0]  %s223, 128, %s226, %s215
        $region32: #{tpu_custom_call.1} parent=27 // pred_fallthru
          _
      $region28: #{tpu_custom_call.1} parent=5 // pred_fallthru
        _
      %p229 = scmp.le.s32.totalorder 1, %s22
      %p230 = scmp.lt.s32.totalorder %s22, 3
      %p231 = pnand %p229, %p230
      %p232 = pneg %p231
      // Predicated region
      $region33: #{tpu_custom_call.1} parent=5 // pred_check
        _
      $region34: #{tpu_custom_call.1} parent=5 // pred_check_branch
        %234 = sbr.rel (%p231) target = $region36
      $region35: #{tpu_custom_call.1} parent=5 // pred_region
        %s235 = ssub.s32 %s22, 1
        %s236 = sand.u32 %s35, 1
        %s237 = scalar_lea.sflag [#allocation6], %s236
        %s238 = sand.u32 %s35, 1
        %s239 = smul.addr %s238, 8
        %s240 = scalar_lea.vmem [#allocation5], %s239
        // Predicated region
        $region37: #{tpu_custom_call.1} parent=35 // pred_check
          %p241 = pneg %p48
        $region38: #{tpu_custom_call.1} parent=35 // pred_check_branch
          %243 = sbr.rel (%p241) target = $region40
        $region39: #{tpu_custom_call.1} parent=35 // pred_region
          %244 = dma.done %s237, 128
        $region40: #{tpu_custom_call.1} parent=35 // pred_fallthru
          _
        // Predicated region
        $region41: #{tpu_custom_call.1} parent=35 // pred_check
          %p245 = pneg %p69
        $region42: #{tpu_custom_call.1} parent=35 // pred_check_branch
          %247 = sbr.rel (%p245) target = $region44
        $region43: #{tpu_custom_call.1} parent=35 // pred_region
          %248 = dma.done [#allocation9], 256
        $region44: #{tpu_custom_call.1} parent=35 // pred_fallthru
          _
        // Predicated region
        $region45: #{tpu_custom_call.1} parent=35 // pred_check
          %p249 = pneg %p90
        $region46: #{tpu_custom_call.1} parent=35 // pred_check_branch
          %251 = sbr.rel (%p249) target = $region48
        $region47: #{tpu_custom_call.1} parent=35 // pred_region
          %252 = dma.done [#allocation9], 256
        $region48: #{tpu_custom_call.1} parent=35 // pred_fallthru
          _
        %s253 = sand.u32 %s35, 1
        %s254 = scalar_lea.sflag [#allocation6], %s253
        %s255 = sand.u32 %s35, 1
        %s256 = smul.addr %s255, 8
        %s257 = scalar_lea.vmem [#allocation5], %s256
        %p258 = pneg %p48
        %p259 = pneg %p45
        %p260 = pneg %p69
        %p261 = pneg %p66
        %p262 = pneg %p90
        %p263 = pneg %p87
        %p264 = pneg %p111
        %p265 = pneg %p108
        %p266 = pneg %p137
        %p267 = pneg %p134
        %s268 = sand.u32 %s124, 1
        %s269 = scalar_lea.sflag [#allocation7], %s268
        %s270 = sand.u32 %s124, 1
        %s271 = smul.addr %s270, 8
        %s272 = scalar_lea.vmem [#allocation11], %s271
        %p273 = pneg %p163
        %p274 = pneg %p160
        %s275 = sand.u32 %s150, 1
        %s276 = scalar_lea.sflag [#allocation13], %s275
        %s277 = sand.u32 %s150, 1
        %s278 = scalar_lea.vmem [#allocation12], %s277
        %v280 = vld [vmem:[%s240] sm:$0xff]
        %v281 = vpack.c.bf16 %v280, %v280
        %v282 = vld [vmem:[#allocation8] sm:$0xf]
        %v283 = vld [vmem:[#allocation8 + $0x4] sm:$0xf]
        %v284 = vld [vmem:[#allocation8 + $0x8] sm:$0xf]
        %v285 = vld [vmem:[#allocation8 + $0xc] sm:$0xf]
        %v290 = vunpack.c.l.b16 %v282
        %v291 = vunpack.c.l.b16 %v283
        %v292 = vunpack.c.l.b16 %v284
        %v293 = vunpack.c.l.b16 %v285
        %v294 = vpack.c.b16 %v291, %v290
        %v295 = vpack.c.b16 %v293, %v292
        %vm298 = vcmask 261120
        %v300 = vsel %vm298, %v281, 0
        %302 = vmatprep.subr.bf16.mxu0 0
        %303 = vmatpush1.bf16.msra.mxu0 %v294
        %304 = vmatprep.subr.bf16.mxu0 0
        %305 = vmatpush1.bf16.msra.mxu0 %v295
        %306 = vmatprep.subr.bf16.mxu0 0
        %307 = vmatpush1.bf16.msra.mxu0 0
        %308 = vmatprep.subr.bf16.mxu0 0
        %309 = vmatpush1.bf16.msra.mxu0 0
        %310 = vmatprep.subr.bf16.mxu0 0
        %311 = vmatpush1.bf16.msra.mxu0 0
        %312 = vmatprep.subr.bf16.mxu0 0
        %313 = vmatpush1.bf16.msra.mxu0 0
        %314 = vmatprep.subr.bf16.mxu0 0
        %315 = vmatpush1.bf16.msra.mxu0 0
        %316 = vmatprep.subr.bf16.mxu0 0
        %317 = vmatpush1.bf16.msra.mxu0 0
        %318 = vmatprep.subr.bf16.mxu0 0
        %319 = vmatpush1.bf16.msra.mxu0 0
        %320 = vmatprep.subr.bf16.mxu0 0
        %321 = vmatpush1.bf16.msra.mxu0 0
        %322 = vmatprep.subr.bf16.mxu0 0
        %323 = vmatpush1.bf16.msra.mxu0 0
        %324 = vmatprep.subr.bf16.mxu0 0
        %325 = vmatpush1.bf16.msra.mxu0 0
        %326 = vmatprep.subr.bf16.mxu0 0
        %327 = vmatpush1.bf16.msra.mxu0 0
        %328 = vmatprep.subr.bf16.mxu0 0
        %329 = vmatpush1.bf16.msra.mxu0 0
        %330 = vmatprep.subr.bf16.mxu0 0
        %331 = vmatpush1.bf16.msra.mxu0 0
        %332 = vmatprep.subr.bf16.mxu0 0
        %333 = vmatpush1.bf16.msra.mxu0 0
        %334 = vmatprep.mubr.bf16.mxu0 0
        %335 = vmatmul.mubr.bf16.gmra.mrb[0].mxu0 %v300
        %v336 = vpop.f32.mrb[0].mxu0
        %v337 = vadd.f32 0.0, %v336
        %v338 = vpop.f32.mrb[0].mxu0
        %v339 = vpop.f32.mrb[0].mxu0
        %v340 = vpop.f32.mrb[0].mxu0
        %341 = vdwg.mxu0
        %v342 = vpack.c.bf16 %v337, %v337
        %vm343 = vcmask 781312
        %344 = vst.msk [vmem:[#allocation2] sm:$0xf] %vm343, %v342
        %vm345 = vcmask 57344
        %346 = vst.msk [vmem:[#allocation4] sm:$0x1] %vm345, 0.0
        %v347 = vld [vmem:[#allocation2] sm:$0xf]
        %v349 = vunpack.c.l.b16 %v347
        %v350 = vpack.c.b16 %v349, %v349
        %351 = vrot.lane.b32.xlu0 %v350, 96
        %v352 = vpop.permute.xlu0 %351
        %vm353 = vcmask 64512
        %v355 = vsel %vm353, %v347, 0
        %v358 = vsel %vm353, %v352, 0
        %360 = vmatprep.subr.bf16.mxu0 0
        %361 = vmatpush1.bf16.xpose.msra.mxu0 %v358
        %362 = vmatprep.subr.bf16.mxu0 0
        %363 = vmatpush1.bf16.xpose.msra.mxu0 0
        %364 = vmatprep.subr.bf16.mxu0 0
        %365 = vmatpush1.bf16.xpose.msra.mxu0 0
        %366 = vmatprep.subr.bf16.mxu0 0
        %367 = vmatpush1.bf16.xpose.msra.mxu0 0
        %368 = vmatprep.subr.bf16.mxu0 0
        %369 = vmatpush1.bf16.xpose.msra.mxu0 0
        %370 = vmatprep.subr.bf16.mxu0 0
        %371 = vmatpush1.bf16.xpose.msra.mxu0 0
        %372 = vmatprep.subr.bf16.mxu0 0
        %373 = vmatpush1.bf16.xpose.msra.mxu0 0
        %374 = vmatprep.subr.bf16.mxu0 0
        %375 = vmatpush1.bf16.xpose.msra.mxu0 0
        %376 = vmatprep.subr.bf16.mxu0 0
        %377 = vmatpush1.bf16.xpose.msra.mxu0 0
        %378 = vmatprep.subr.bf16.mxu0 0
        %379 = vmatpush1.bf16.xpose.msra.mxu0 0
        %380 = vmatprep.subr.bf16.mxu0 0
        %381 = vmatpush1.bf16.xpose.msra.mxu0 0
        %382 = vmatprep.subr.bf16.mxu0 0
        %383 = vmatpush1.bf16.xpose.msra.mxu0 0
        %384 = vmatprep.subr.bf16.mxu0 0
        %385 = vmatpush1.bf16.xpose.msra.mxu0 0
        %386 = vmatprep.subr.bf16.mxu0 0
        %387 = vmatpush1.bf16.xpose.msra.mxu0 0
        %388 = vmatprep.subr.bf16.mxu0 0
        %389 = vmatpush1.bf16.xpose.msra.mxu0 0
        %390 = vmatprep.subr.bf16.mxu0 0
        %391 = vmatpush1.bf16.xpose.msra.mxu0 0
        %392 = vmatprep.mubr.bf16.mxu0 0
        %393 = vmatmul.mubr.bf16.gmra.mrb[0].mxu0 %v355
        %v394 = vpop.f32.mrb[0].mxu0
        %v395 = vadd.f32 0.0, %v394
        %v396 = vpop.f32.mrb[0].mxu0
        %v397 = vpop.f32.mrb[0].mxu0
        %v398 = vpop.f32.mrb[0].mxu0
        %399 = vdwg.mxu0
        %v400 = vsel %vm353, %v395, -inf
        %401 = vmax.xlane.f32.xlu0 %v400
        %v402 = vpop.xlane.xlu0 %401
        %v403 = vsub.f32 %v395, %v402
        %v404 = vmul.f32 %v403, 1.442695
        %v405 = vpow.pop %v404
        %v406 = vsel %vm353, %v405, 0.0
        %407 = vadd.xlane.f32.xlu0 %v406
        %v408 = vpop.xlane.xlu0 %407
        %v409 = vpack.c.bf16 %v405, %v405
        %410 = vrot.lane.b32.xlu0 %v350, 64
        %v411 = vpop.permute.xlu0 %410
        %v413 = vsel %vm353, %v409, 0
        %vm415 = vcmask 1043456
        %v417 = vsel %vm415, %v411, 0
        %419 = vmatprep.subr.bf16.mxu0 0
        %420 = vmatpush1.bf16.msra.mxu0 %v417
        %421 = vmatprep.subr.bf16.mxu0 0
        %422 = vmatpush1.bf16.msra.mxu0 0
        %423 = vmatprep.subr.bf16.mxu0 0
        %424 = vmatpush1.bf16.msra.mxu0 0
        %425 = vmatprep.subr.bf16.mxu0 0
        %426 = vmatpush1.bf16.msra.mxu0 0
        %427 = vmatprep.subr.bf16.mxu0 0
        %428 = vmatpush1.bf16.msra.mxu0 0
        %429 = vmatprep.subr.bf16.mxu0 0
        %430 = vmatpush1.bf16.msra.mxu0 0
        %431 = vmatprep.subr.bf16.mxu0 0
        %432 = vmatpush1.bf16.msra.mxu0 0
        %433 = vmatprep.subr.bf16.mxu0 0
        %434 = vmatpush1.bf16.msra.mxu0 0
        %435 = vmatprep.subr.bf16.mxu0 0
        %436 = vmatpush1.bf16.msra.mxu0 0
        %437 = vmatprep.subr.bf16.mxu0 0
        %438 = vmatpush1.bf16.msra.mxu0 0
        %439 = vmatprep.subr.bf16.mxu0 0
        %440 = vmatpush1.bf16.msra.mxu0 0
        %441 = vmatprep.subr.bf16.mxu0 0
        %442 = vmatpush1.bf16.msra.mxu0 0
        %443 = vmatprep.subr.bf16.mxu0 0
        %444 = vmatpush1.bf16.msra.mxu0 0
        %445 = vmatprep.subr.bf16.mxu0 0
        %446 = vmatpush1.bf16.msra.mxu0 0
        %447 = vmatprep.subr.bf16.mxu0 0
        %448 = vmatpush1.bf16.msra.mxu0 0
        %449 = vmatprep.subr.bf16.mxu0 0
        %450 = vmatpush1.bf16.msra.mxu0 0
        %451 = vmatprep.mubr.bf16.mxu0 0
        %452 = vmatmul.mubr.bf16.gmra.mrb[0].mxu0 %v413
        %v453 = vpop.f32.mrb[0].mxu0
        %v454 = vadd.f32 0.0, %v453
        %v455 = vpop.f32.mrb[0].mxu0
        %v456 = vpop.f32.mrb[0].mxu0
        %v457 = vpop.f32.mrb[0].mxu0
        %458 = vdwg.mxu0
        %v459 = vrcp.pop %v408
        %v460 = vmul.f32 %v454, %v459
        %v461 = vpack.c.bf16 %v460, %v460
        %vm462 = vcmask 60416
        %463 = vst.msk [vmem:[#allocation3] sm:$0xf] %vm462, %v461
        %v464 = vld [vmem:[#allocation4] sm:$0x1]
        %v465 = vrcp.pop %v408
        %v466 = vmul.f32 %v405, %v465
        %v467 = vadd.f32 %v464, %v466
        %468 = vst.msk [vmem:[#allocation4] sm:$0x1] %vm345, %v467
        %v469 = vld [vmem:[#allocation2] sm:$0xf]
        %v471 = vunpack.c.l.b16 %v469
        %v472 = vpack.c.b16 %v471, %v471
        %473 = vrot.lane.b32.xlu0 %v472, 120
        %v474 = vpop.permute.xlu0 %473
        %475 = vrot.lane.b32.xlu0 %v472, 88
        %v476 = vpop.permute.xlu0 %475
        %v478 = vsel %vm353, %v474, 0
        %v481 = vsel %vm353, %v476, 0
        %483 = vmatprep.subr.bf16.mxu0 0
        %484 = vmatpush1.bf16.xpose.msra.mxu0 %v481
        %485 = vmatprep.subr.bf16.mxu0 0
        %486 = vmatpush1.bf16.xpose.msra.mxu0 0
        %487 = vmatprep.subr.bf16.mxu0 0
        %488 = vmatpush1.bf16.xpose.msra.mxu0 0
        %489 = vmatprep.subr.bf16.mxu0 0
        %490 = vmatpush1.bf16.xpose.msra.mxu0 0
        %491 = vmatprep.subr.bf16.mxu0 0
        %492 = vmatpush1.bf16.xpose.msra.mxu0 0
        %493 = vmatprep.subr.bf16.mxu0 0
        %494 = vmatpush1.bf16.xpose.msra.mxu0 0
        %495 = vmatprep.subr.bf16.mxu0 0
        %496 = vmatpush1.bf16.xpose.msra.mxu0 0
        %497 = vmatprep.subr.bf16.mxu0 0
        %498 = vmatpush1.bf16.xpose.msra.mxu0 0
        %499 = vmatprep.subr.bf16.mxu0 0
        %500 = vmatpush1.bf16.xpose.msra.mxu0 0
        %501 = vmatprep.subr.bf16.mxu0 0
        %502 = vmatpush1.bf16.xpose.msra.mxu0 0
        %503 = vmatprep.subr.bf16.mxu0 0
        %504 = vmatpush1.bf16.xpose.msra.mxu0 0
        %505 = vmatprep.subr.bf16.mxu0 0
        %506 = vmatpush1.bf16.xpose.msra.mxu0 0
        %507 = vmatprep.subr.bf16.mxu0 0
        %508 = vmatpush1.bf16.xpose.msra.mxu0 0
        %509 = vmatprep.subr.bf16.mxu0 0
        %510 = vmatpush1.bf16.xpose.msra.mxu0 0
        %511 = vmatprep.subr.bf16.mxu0 0
        %512 = vmatpush1.bf16.xpose.msra.mxu0 0
        %513 = vmatprep.subr.bf16.mxu0 0
        %514 = vmatpush1.bf16.xpose.msra.mxu0 0
        %515 = vmatprep.mubr.bf16.mxu0 0
        %516 = vmatmul.mubr.bf16.gmra.mrb[0].mxu0 %v478
        %v517 = vpop.f32.mrb[0].mxu0
        %v518 = vadd.f32 0.0, %v517
        %v519 = vpop.f32.mrb[0].mxu0
        %v520 = vpop.f32.mrb[0].mxu0
        %v521 = vpop.f32.mrb[0].mxu0
        %522 = vdwg.mxu0
        %v523 = vsel %vm353, %v518, -inf
        %524 = vmax.xlane.f32.xlu0 %v523
        %v525 = vpop.xlane.xlu0 %524
        %v526 = vsub.f32 %v518, %v525
        %v527 = vmul.f32 %v526, 1.442695
        %v528 = vpow.pop %v527
        %v529 = vsel %vm353, %v528, 0.0
        %530 = vadd.xlane.f32.xlu0 %v529
        %v531 = vpop.xlane.xlu0 %530
        %v532 = vpack.c.bf16 %v528, %v528
        %533 = vrot.lane.b32.xlu0 %v472, 56
        %v534 = vpop.permute.xlu0 %533
        %v536 = vsel %vm353, %v532, 0
        %v539 = vsel %vm415, %v534, 0
        %541 = vmatprep.subr.bf16.mxu0 0
        %542 = vmatpush1.bf16.msra.mxu0 %v539
        %543 = vmatprep.subr.bf16.mxu0 0
        %544 = vmatpush1.bf16.msra.mxu0 0
        %545 = vmatprep.subr.bf16.mxu0 0
        %546 = vmatpush1.bf16.msra.mxu0 0
        %547 = vmatprep.subr.bf16.mxu0 0
        %548 = vmatpush1.bf16.msra.mxu0 0
        %549 = vmatprep.subr.bf16.mxu0 0
        %550 = vmatpush1.bf16.msra.mxu0 0
        %551 = vmatprep.subr.bf16.mxu0 0
        %552 = vmatpush1.bf16.msra.mxu0 0
        %553 = vmatprep.subr.bf16.mxu0 0
        %554 = vmatpush1.bf16.msra.mxu0 0
        %555 = vmatprep.subr.bf16.mxu0 0
        %556 = vmatpush1.bf16.msra.mxu0 0
        %557 = vmatprep.subr.bf16.mxu0 0
        %558 = vmatpush1.bf16.msra.mxu0 0
        %559 = vmatprep.subr.bf16.mxu0 0
        %560 = vmatpush1.bf16.msra.mxu0 0
        %561 = vmatprep.subr.bf16.mxu0 0
        %562 = vmatpush1.bf16.msra.mxu0 0
        %563 = vmatprep.subr.bf16.mxu0 0
        %564 = vmatpush1.bf16.msra.mxu0 0
        %565 = vmatprep.subr.bf16.mxu0 0
        %566 = vmatpush1.bf16.msra.mxu0 0
        %567 = vmatprep.subr.bf16.mxu0 0
        %568 = vmatpush1.bf16.msra.mxu0 0
        %569 = vmatprep.subr.bf16.mxu0 0
        %570 = vmatpush1.bf16.msra.mxu0 0
        %571 = vmatprep.subr.bf16.mxu0 0
        %572 = vmatpush1.bf16.msra.mxu0 0
        %573 = vmatprep.mubr.bf16.mxu0 0
        %574 = vmatmul.mubr.bf16.gmra.mrb[0].mxu0 %v536
        %v575 = vpop.f32.mrb[0].mxu0
        %v576 = vadd.f32 0.0, %v575
        %v577 = vpop.f32.mrb[0].mxu0
        %v578 = vpop.f32.mrb[0].mxu0
        %v579 = vpop.f32.mrb[0].mxu0
        %580 = vdwg.mxu0
        %v581 = vrcp.pop %v531
        %v582 = vmul.f32 %v576, %v581
        %v583 = vpack.c.bf16 %v582, %v582
        %v585 = vunpack.c.l.b16 %v583
        %v586 = vpack.c.b16 %v585, %v585
        %587 = vrot.lane.b32.xlu0 %v586, 8
        %v588 = vpop.permute.xlu0 %587
        %vm590 = vcmask 126016
        %591 = vst.msk [vmem:[#allocation3] sm:$0xf] %vm590, %v588
        %v592 = vld [vmem:[#allocation4] sm:$0x1]
        %v593 = vrcp.pop %v531
        %v594 = vmul.f32 %v528, %v593
        %v595 = vadd.f32 %v592, %v594
        %596 = vst.msk [vmem:[#allocation4] sm:$0x1] %vm345, %v595
        %v597 = vld [vmem:[#allocation2] sm:$0xf]
        %v599 = vunpack.c.l.b16 %v597
        %v600 = vpack.c.b16 %v599, %v599
        %601 = vrot.lane.b32.xlu0 %v600, 112
        %v602 = vpop.permute.xlu0 %601
        %603 = vrot.lane.b32.xlu0 %v600, 80
        %v604 = vpop.permute.xlu0 %603
        %v606 = vsel %vm353, %v602, 0
        %v609 = vsel %vm353, %v604, 0
        %611 = vmatprep.subr.bf16.mxu0 0
        %612 = vmatpush1.bf16.xpose.msra.mxu0 %v609
        %613 = vmatprep.subr.bf16.mxu0 0
        %614 = vmatpush1.bf16.xpose.msra.mxu0 0
        %615 = vmatprep.subr.bf16.mxu0 0
        %616 = vmatpush1.bf16.xpose.msra.mxu0 0
        %617 = vmatprep.subr.bf16.mxu0 0
        %618 = vmatpush1.bf16.xpose.msra.mxu0 0
        %619 = vmatprep.subr.bf16.mxu0 0
        %620 = vmatpush1.bf16.xpose.msra.mxu0 0
        %621 = vmatprep.subr.bf16.mxu0 0
        %622 = vmatpush1.bf16.xpose.msra.mxu0 0
        %623 = vmatprep.subr.bf16.mxu0 0
        %624 = vmatpush1.bf16.xpose.msra.mxu0 0
        %625 = vmatprep.subr.bf16.mxu0 0
        %626 = vmatpush1.bf16.xpose.msra.mxu0 0
        %627 = vmatprep.subr.bf16.mxu0 0
        %628 = vmatpush1.bf16.xpose.msra.mxu0 0
        %629 = vmatprep.subr.bf16.mxu0 0
        %630 = vmatpush1.bf16.xpose.msra.mxu0 0
        %631 = vmatprep.subr.bf16.mxu0 0
        %632 = vmatpush1.bf16.xpose.msra.mxu0 0
        %633 = vmatprep.subr.bf16.mxu0 0
        %634 = vmatpush1.bf16.xpose.msra.mxu0 0
        %635 = vmatprep.subr.bf16.mxu0 0
        %636 = vmatpush1.bf16.xpose.msra.mxu0 0
        %637 = vmatprep.subr.bf16.mxu0 0
        %638 = vmatpush1.bf16.xpose.msra.mxu0 0
        %639 = vmatprep.subr.bf16.mxu0 0
        %640 = vmatpush1.bf16.xpose.msra.mxu0 0
        %641 = vmatprep.subr.bf16.mxu0 0
        %642 = vmatpush1.bf16.xpose.msra.mxu0 0
        %643 = vmatprep.mubr.bf16.mxu0 0
        %644 = vmatmul.mubr.bf16.gmra.mrb[0].mxu0 %v606
        %v645 = vpop.f32.mrb[0].mxu0
        %v646 = vadd.f32 0.0, %v645
        %v647 = vpop.f32.mrb[0].mxu0
        %v648 = vpop.f32.mrb[0].mxu0
        %v649 = vpop.f32.mrb[0].mxu0
        %650 = vdwg.mxu0
        %v651 = vsel %vm353, %v646, -inf
        %652 = vmax.xlane.f32.xlu0 %v651
        %v653 = vpop.xlane.xlu0 %652
        %v654 = vsub.f32 %v646, %v653
        %v655 = vmul.f32 %v654, 1.442695
        %v656 = vpow.pop %v655
        %v657 = vsel %vm353, %v656, 0.0
        %658 = vadd.xlane.f32.xlu0 %v657
        %v659 = vpop.xlane.xlu0 %658
        %v660 = vpack.c.bf16 %v656, %v656
        %661 = vrot.lane.b32.xlu0 %v600, 48
        %v662 = vpop.permute.xlu0 %661
        %v664 = vsel %vm353, %v660, 0
        %v667 = vsel %vm415, %v662, 0
        %669 = vmatprep.subr.bf16.mxu0 0
        %670 = vmatpush1.bf16.msra.mxu0 %v667
        %671 = vmatprep.subr.bf16.mxu0 0
        %672 = vmatpush1.bf16.msra.mxu0 0
        %673 = vmatprep.subr.bf16.mxu0 0
        %674 = vmatpush1.bf16.msra.mxu0 0
        %675 = vmatprep.subr.bf16.mxu0 0
        %676 = vmatpush1.bf16.msra.mxu0 0
        %677 = vmatprep.subr.bf16.mxu0 0
        %678 = vmatpush1.bf16.msra.mxu0 0
        %679 = vmatprep.subr.bf16.mxu0 0
        %680 = vmatpush1.bf16.msra.mxu0 0
        %681 = vmatprep.subr.bf16.mxu0 0
        %682 = vmatpush1.bf16.msra.mxu0 0
        %683 = vmatprep.subr.bf16.mxu0 0
        %684 = vmatpush1.bf16.msra.mxu0 0
        %685 = vmatprep.subr.bf16.mxu0 0
        %686 = vmatpush1.bf16.msra.mxu0 0
        %687 = vmatprep.subr.bf16.mxu0 0
        %688 = vmatpush1.bf16.msra.mxu0 0
        %689 = vmatprep.subr.bf16.mxu0 0
        %690 = vmatpush1.bf16.msra.mxu0 0
        %691 = vmatprep.subr.bf16.mxu0 0
        %692 = vmatpush1.bf16.msra.mxu0 0
        %693 = vmatprep.subr.bf16.mxu0 0
        %694 = vmatpush1.bf16.msra.mxu0 0
        %695 = vmatprep.subr.bf16.mxu0 0
        %696 = vmatpush1.bf16.msra.mxu0 0
        %697 = vmatprep.subr.bf16.mxu0 0
        %698 = vmatpush1.bf16.msra.mxu0 0
        %699 = vmatprep.subr.bf16.mxu0 0
        %700 = vmatpush1.bf16.msra.mxu0 0
        %701 = vmatprep.mubr.bf16.mxu0 0
        %702 = vmatmul.mubr.bf16.gmra.mrb[0].mxu0 %v664
        %v703 = vpop.f32.mrb[0].mxu0
        %v704 = vadd.f32 0.0, %v703
        %v705 = vpop.f32.mrb[0].mxu0
        %v706 = vpop.f32.mrb[0].mxu0
        %v707 = vpop.f32.mrb[0].mxu0
        %708 = vdwg.mxu0
        %v709 = vrcp.pop %v659
        %v710 = vmul.f32 %v704, %v709
        %v711 = vpack.c.bf16 %v710, %v710
        %v713 = vunpack.c.l.b16 %v711
        %v714 = vpack.c.b16 %v713, %v713
        %715 = vrot.lane.b32.xlu0 %v714, 16
        %v716 = vpop.permute.xlu0 %715
        %vm718 = vcmask 191616
        %719 = vst.msk [vmem:[#allocation3] sm:$0xf] %vm718, %v716
        %v720 = vld [vmem:[#allocation4] sm:$0x1]
        %v721 = vrcp.pop %v659
        %v722 = vmul.f32 %v656, %v721
        %v723 = vadd.f32 %v720, %v722
        %724 = vst.msk [vmem:[#allocation4] sm:$0x1] %vm345, %v723
        %v725 = vld [vmem:[#allocation2] sm:$0xf]
        %v727 = vunpack.c.l.b16 %v725
        %v728 = vpack.c.b16 %v727, %v727
        %729 = vrot.lane.b32.xlu0 %v728, 104
        %v730 = vpop.permute.xlu0 %729
        %731 = vrot.lane.b32.xlu0 %v728, 72
        %v732 = vpop.permute.xlu0 %731
        %v734 = vsel %vm353, %v730, 0
        %v737 = vsel %vm353, %v732, 0
        %739 = vmatprep.subr.bf16.mxu0 0
        %740 = vmatpush1.bf16.xpose.msra.mxu0 %v737
        %741 = vmatprep.subr.bf16.mxu0 0
        %742 = vmatpush1.bf16.xpose.msra.mxu0 0
        %743 = vmatprep.subr.bf16.mxu0 0
        %744 = vmatpush1.bf16.xpose.msra.mxu0 0
        %745 = vmatprep.subr.bf16.mxu0 0
        %746 = vmatpush1.bf16.xpose.msra.mxu0 0
        %747 = vmatprep.subr.bf16.mxu0 0
        %748 = vmatpush1.bf16.xpose.msra.mxu0 0
        %749 = vmatprep.subr.bf16.mxu0 0
        %750 = vmatpush1.bf16.xpose.msra.mxu0 0
        %751 = vmatprep.subr.bf16.mxu0 0
        %752 = vmatpush1.bf16.xpose.msra.mxu0 0
        %753 = vmatprep.subr.bf16.mxu0 0
        %754 = vmatpush1.bf16.xpose.msra.mxu0 0
        %755 = vmatprep.subr.bf16.mxu0 0
        %756 = vmatpush1.bf16.xpose.msra.mxu0 0
        %757 = vmatprep.subr.bf16.mxu0 0
        %758 = vmatpush1.bf16.xpose.msra.mxu0 0
        %759 = vmatprep.subr.bf16.mxu0 0
        %760 = vmatpush1.bf16.xpose.msra.mxu0 0
        %761 = vmatprep.subr.bf16.mxu0 0
        %762 = vmatpush1.bf16.xpose.msra.mxu0 0
        %763 = vmatprep.subr.bf16.mxu0 0
        %764 = vmatpush1.bf16.xpose.msra.mxu0 0
        %765 = vmatprep.subr.bf16.mxu0 0
        %766 = vmatpush1.bf16.xpose.msra.mxu0 0
        %767 = vmatprep.subr.bf16.mxu0 0
        %768 = vmatpush1.bf16.xpose.msra.mxu0 0
        %769 = vmatprep.subr.bf16.mxu0 0
        %770 = vmatpush1.bf16.xpose.msra.mxu0 0
        %771 = vmatprep.mubr.bf16.mxu0 0
        %772 = vmatmul.mubr.bf16.gmra.mrb[0].mxu0 %v734
        %v773 = vpop.f32.mrb[0].mxu0
        %v774 = vadd.f32 0.0, %v773
        %v775 = vpop.f32.mrb[0].mxu0
        %v776 = vpop.f32.mrb[0].mxu0
        %v777 = vpop.f32.mrb[0].mxu0
        %778 = vdwg.mxu0
        %v779 = vsel %vm353, %v774, -inf
        %780 = vmax.xlane.f32.xlu0 %v779
        %v781 = vpop.xlane.xlu0 %780
        %v782 = vsub.f32 %v774, %v781
        %v783 = vmul.f32 %v782, 1.442695
        %v784 = vpow.pop %v783
        %v785 = vsel %vm353, %v784, 0.0
        %786 = vadd.xlane.f32.xlu0 %v785
        %v787 = vpop.xlane.xlu0 %786
        %v788 = vpack.c.bf16 %v784, %v784
        %789 = vrot.lane.b32.xlu0 %v728, 40
        %v790 = vpop.permute.xlu0 %789
        %v792 = vsel %vm353, %v788, 0
        %v795 = vsel %vm415, %v790, 0
        %797 = vmatprep.subr.bf16.mxu0 0
        %798 = vmatpush1.bf16.msra.mxu0 %v795
        %799 = vmatprep.subr.bf16.mxu0 0
        %800 = vmatpush1.bf16.msra.mxu0 0
        %801 = vmatprep.subr.bf16.mxu0 0
        %802 = vmatpush1.bf16.msra.mxu0 0
        %803 = vmatprep.subr.bf16.mxu0 0
        %804 = vmatpush1.bf16.msra.mxu0 0
        %805 = vmatprep.subr.bf16.mxu0 0
        %806 = vmatpush1.bf16.msra.mxu0 0
        %807 = vmatprep.subr.bf16.mxu0 0
        %808 = vmatpush1.bf16.msra.mxu0 0
        %809 = vmatprep.subr.bf16.mxu0 0
        %810 = vmatpush1.bf16.msra.mxu0 0
        %811 = vmatprep.subr.bf16.mxu0 0
        %812 = vmatpush1.bf16.msra.mxu0 0
        %813 = vmatprep.subr.bf16.mxu0 0
        %814 = vmatpush1.bf16.msra.mxu0 0
        %815 = vmatprep.subr.bf16.mxu0 0
        %816 = vmatpush1.bf16.msra.mxu0 0
        %817 = vmatprep.subr.bf16.mxu0 0
        %818 = vmatpush1.bf16.msra.mxu0 0
        %819 = vmatprep.subr.bf16.mxu0 0
        %820 = vmatpush1.bf16.msra.mxu0 0
        %821 = vmatprep.subr.bf16.mxu0 0
        %822 = vmatpush1.bf16.msra.mxu0 0
        %823 = vmatprep.subr.bf16.mxu0 0
        %824 = vmatpush1.bf16.msra.mxu0 0
        %825 = vmatprep.subr.bf16.mxu0 0
        %826 = vmatpush1.bf16.msra.mxu0 0
        %827 = vmatprep.subr.bf16.mxu0 0
        %828 = vmatpush1.bf16.msra.mxu0 0
        %829 = vmatprep.mubr.bf16.mxu0 0
        %830 = vmatmul.mubr.bf16.gmra.mrb[0].mxu0 %v792
        %v831 = vpop.f32.mrb[0].mxu0
        %v832 = vadd.f32 0.0, %v831
        %v833 = vpop.f32.mrb[0].mxu0
        %v834 = vpop.f32.mrb[0].mxu0
        %v835 = vpop.f32.mrb[0].mxu0
        %836 = vdwg.mxu0
        %v837 = vrcp.pop %v787
        %v838 = vmul.f32 %v832, %v837
        %v839 = vpack.c.bf16 %v838, %v838
        %v841 = vunpack.c.l.b16 %v839
        %v842 = vpack.c.b16 %v841, %v841
        %843 = vrot.lane.b32.xlu0 %v842, 24
        %v844 = vpop.permute.xlu0 %843
        %vm846 = vcmask 257216
        %847 = vst.msk [vmem:[#allocation3] sm:$0xf] %vm846, %v844
        %v848 = vld [vmem:[#allocation4] sm:$0x1]
        %v849 = vrcp.pop %v787
        %v850 = vmul.f32 %v784, %v849
        %v851 = vadd.f32 %v848, %v850
        %852 = vst.msk [vmem:[#allocation4] sm:$0x1] %vm345, %v851
        %v853 = vld [vmem:[#allocation3] sm:$0xf]
        %v854 = vld [vmem:[#allocation10] sm:$0xf]
        %v855 = vld [vmem:[#allocation10 + $0x4] sm:$0xf]
        %v856 = vld [vmem:[#allocation10 + $0x8] sm:$0xf]
        %v857 = vld [vmem:[#allocation10 + $0xc] sm:$0xf]
        %v858 = vld [vmem:[%s3] sm:$0x1]
        %v860 = vlaneseq
        %v861 = vshrl.u32 %v860, 7
        %v862 = vsub.s32 0, %v861
        %v863 = vrot.slane %v858, %v862
        %v869 = vunpack.c.l.b16 %v854
        %v870 = vunpack.c.l.b16 %v855
        %v871 = vunpack.c.l.b16 %v856
        %v872 = vunpack.c.l.b16 %v857
        %v873 = vpack.c.b16 %v870, %v869
        %v874 = vpack.c.b16 %v872, %v871
        %v878 = vsel %vm298, %v853, 0
        %880 = vmatprep.subr.bf16.mxu0 0
        %881 = vmatpush1.bf16.msra.mxu0 %v873
        %882 = vmatprep.subr.bf16.mxu0 0
        %883 = vmatpush1.bf16.msra.mxu0 %v874
        %884 = vmatprep.subr.bf16.mxu0 0
        %885 = vmatpush1.bf16.msra.mxu0 0
        %886 = vmatprep.subr.bf16.mxu0 0
        %887 = vmatpush1.bf16.msra.mxu0 0
        %888 = vmatprep.subr.bf16.mxu0 0
        %889 = vmatpush1.bf16.msra.mxu0 0
        %890 = vmatprep.subr.bf16.mxu0 0
        %891 = vmatpush1.bf16.msra.mxu0 0
        %892 = vmatprep.subr.bf16.mxu0 0
        %893 = vmatpush1.bf16.msra.mxu0 0
        %894 = vmatprep.subr.bf16.mxu0 0
        %895 = vmatpush1.bf16.msra.mxu0 0
        %896 = vmatprep.subr.bf16.mxu0 0
        %897 = vmatpush1.bf16.msra.mxu0 0
        %898 = vmatprep.subr.bf16.mxu0 0
        %899 = vmatpush1.bf16.msra.mxu0 0
        %900 = vmatprep.subr.bf16.mxu0 0
        %901 = vmatpush1.bf16.msra.mxu0 0
        %902 = vmatprep.subr.bf16.mxu0 0
        %903 = vmatpush1.bf16.msra.mxu0 0
        %904 = vmatprep.subr.bf16.mxu0 0
        %905 = vmatpush1.bf16.msra.mxu0 0
        %906 = vmatprep.subr.bf16.mxu0 0
        %907 = vmatpush1.bf16.msra.mxu0 0
        %908 = vmatprep.subr.bf16.mxu0 0
        %909 = vmatpush1.bf16.msra.mxu0 0
        %910 = vmatprep.subr.bf16.mxu0 0
        %911 = vmatpush1.bf16.msra.mxu0 0
        %912 = vmatprep.mubr.bf16.mxu0 0
        %913 = vmatmul.mubr.bf16.gmra.mrb[0].mxu0 %v878
        %v914 = vpop.f32.mrb[0].mxu0
        %v915 = vadd.f32 %v863, %v914
        %v916 = vpop.f32.mrb[0].mxu0
        %v917 = vpop.f32.mrb[0].mxu0
        %v918 = vpop.f32.mrb[0].mxu0
        %919 = vdwg.mxu0
        %920 = vst.msk [vmem:[%s272] sm:$0xff] %vm298, %v915
        %v921 = vld [vmem:[#allocation4] sm:$0x1]
        %v922 = vmul.f32 %v921, 0.25
        %923 = vst.msk [vmem:[%s278] sm:$0x1] %vm345, %v922
        %s924 = sand.u32 %s124, 1
        %s925 = scalar_lea.sflag [#allocation7], %s924
        %s926 = sand.u32 %s124, 1
        %s927 = smul.addr %s926, 8
        %s928 = scalar_lea.vmem [#allocation11], %s927
        %s929 = sand.u32 %s150, 1
        %s930 = scalar_lea.sflag [#allocation13], %s929
        %s931 = sand.u32 %s150, 1
        %s932 = scalar_lea.vmem [#allocation12], %s931
        // Predicated region
        $region49: #{tpu_custom_call.1} parent=35 // pred_check
          %p933 = pneg %p134
        $region50: #{tpu_custom_call.1} parent=35 // pred_check_branch
          %935 = sbr.rel (%p933) target = $region52
        $region51: #{tpu_custom_call.1} parent=35 // pred_region
          %s937 = ssub.s32 128, 128
          %938 = vsyncadd %s925, %s937
          %s939 = smul.addr %s27, 128
          %s940 = scalar_lea.hbm %s4, %s939
          %s942 = sshll.u32 %s928, 4
          %s943 = int_to_ptr.vmem [resolvable:$true] %s942
          %945 = dma.vmem_to_hbm [thread:$0]  %s943, 128, %s940, %s925
        $region52: #{tpu_custom_call.1} parent=35 // pred_fallthru
          _
        // Predicated region
        $region53: #{tpu_custom_call.1} parent=35 // pred_check
          %p946 = pneg %p160
        $region54: #{tpu_custom_call.1} parent=35 // pred_check_branch
          %948 = sbr.rel (%p946) target = $region56
        $region55: #{tpu_custom_call.1} parent=35 // pred_region
          %s950 = ssub.s32 16, 16
          %951 = vsyncadd %s930, %s950
          %s952 = smul.addr %s27, 16
          %s953 = scalar_lea.hbm %s5, %s952
          %s955 = sshll.u32 %s932, 4
          %s956 = int_to_ptr.vmem [resolvable:$true] %s955
          %958 = dma.vmem_to_hbm [thread:$0]  %s956, 16, %s953, %s930
        $region56: #{tpu_custom_call.1} parent=35 // pred_fallthru
          _
      $region36: #{tpu_custom_call.1} parent=5 // pred_fallthru
        _
      %p959 = scmp.le.s32.totalorder 2, %s22
      // Predicated region
      $region57: #{tpu_custom_call.1} parent=5 // pred_check
        %p960 = pneg %p959
      $region58: #{tpu_custom_call.1} parent=5 // pred_check_branch
        %962 = sbr.rel (%p960) target = $region60
      $region59: #{tpu_custom_call.1} parent=5 // pred_region
        %s963 = ssub.s32 %s22, 2
        // Predicated region
        $region61: #{tpu_custom_call.1} parent=59 // pred_check
          %p964 = pneg %p140
        $region62: #{tpu_custom_call.1} parent=59 // pred_check_branch
          %966 = sbr.rel (%p964) target = $region64
        $region63: #{tpu_custom_call.1} parent=59 // pred_region
          %s967 = sand.u32 %s125, 1
          %s968 = scalar_lea.sflag [#allocation7], %s967
          %s969 = sand.u32 %s125, 1
          %s970 = smul.addr %s969, 8
          %s971 = scalar_lea.vmem [#allocation11], %s970
          %972 = dma.done %s968, 128
        $region64: #{tpu_custom_call.1} parent=59 // pred_fallthru
          _
        // Predicated region
        $region65: #{tpu_custom_call.1} parent=59 // pred_check
          %p973 = pneg %p166
        $region66: #{tpu_custom_call.1} parent=59 // pred_check_branch
          %975 = sbr.rel (%p973) target = $region68
        $region67: #{tpu_custom_call.1} parent=59 // pred_region
          %s976 = sand.u32 %s151, 1
          %s977 = scalar_lea.sflag [#allocation13], %s976
          %s978 = sand.u32 %s151, 1
          %s979 = scalar_lea.vmem [#allocation12], %s978
          %980 = dma.done %s977, 16
        $region68: #{tpu_custom_call.1} parent=59 // pred_fallthru
          _
      $region60: #{tpu_custom_call.1} parent=5 // pred_fallthru
        _
    $region6: #{tpu_custom_call.1} parent=1 // loop_footer
      %s26 = sadd.s32 1, %s22
    $region7: #{tpu_custom_call.1} parent=1 // loop_footer_branch
      %21 = sbr.rel target = $region3
    $region8: #{tpu_custom_call.1} parent=1 // loop_exit
      _
    %981 = vsyncpa [#allocation6], 1
    %s982 = scalar_lea.sflag [#allocation6], 1
    %983 = vsyncpa %s982, 1
    %984 = vsyncpa [#allocation9], 1
    %985 = vsyncpa [#allocation7], 1
    %s986 = scalar_lea.sflag [#allocation7], 1
    %987 = vsyncpa %s986, 1
    %988 = vsyncpa [#allocation13], 1
    %s989 = scalar_lea.sflag [#allocation13], 1
    %990 = vsyncpa %s989, 1

</llo_original>
